<compile_context>
chip_gen: v5e
topology: v5e:2x2
jax: 0.10.0
libtpu: 0.0.40
codegen_flags: <defaults>
</compile_context>

<pallas_src>
import math
from functools import lru_cache, partial

import jax
import jax.numpy as jnp
from jax.experimental import pallas as pl
from jax.experimental.pallas import tpu as pltpu


def _round_up(v, m):
    return (v + m - 1) // m * m


# ----------------------------------------------------------------------------
# One-time probe of pltpu.roll's rotation convention (cheap insurance so the
# dilation shift direction is correct on any jax/libtpu version).
# ----------------------------------------------------------------------------
@lru_cache(maxsize=None)
def _roll_matches_jnp():
    def k(x_ref, o_ref):
        o_ref[...] = pltpu.roll(x_ref[...], 1, 1)

    x = jax.lax.broadcasted_iota(jnp.float32, (8, 128), 1)
    out = pl.pallas_call(
        k, out_shape=jax.ShapeDtypeStruct((8, 128), jnp.float32))(x)
    return bool(jnp.array_equal(out, jnp.roll(x, 1, 1)))


def _roll_plus(h, dil, jnp_convention):
    """rolled[c, f] = h[c, (f + dil) mod F] using the XLU lane rotator."""
    f = h.shape[1]
    shift = (f - dil) % f if jnp_convention else dil
    return pltpu.roll(h, shift, 1)


# ----------------------------------------------------------------------------
# Pallas kernel: whole gated-CNN stack for one batch block (lane-dense layout).
# ----------------------------------------------------------------------------
def gated_cnn_kernel(x_ref, w0_ref, b0_ref, w1_ref, b1_ref, w2_ref, b2_ref,
                     out_ref, *, h0_pad, h1_pad, jnp_roll):
    x = x_ref[...]                                               # (c_in_pad, F)

    # Gated block 0 (k=2, dilation 1): one fused matmul for tanh + gate branch.
    h2 = jnp.concatenate([x, _roll_plus(x, 1, jnp_roll)], axis=0)
    ag = jnp.dot(w0_ref[...], h2, preferred_element_type=jnp.float32) + b0_ref[...]
    h = jnp.tanh(ag[:h0_pad]) * jax.nn.sigmoid(ag[h0_pad:])      # (h0_pad, F)

    # Gated block 1 (k=2, dilation 2).
    h2 = jnp.concatenate([h, _roll_plus(h, 2, jnp_roll)], axis=0)
    ag = jnp.dot(w1_ref[...], h2, preferred_element_type=jnp.float32) + b1_ref[...]
    h = jnp.tanh(ag[:h1_pad]) * jax.nn.sigmoid(ag[h1_pad:])      # (h1_pad, F)

    # Head conv (k=2, dilation 4): single unmasked full-lane-width store.
    h2 = jnp.concatenate([h, _roll_plus(h, 4, jnp_roll)], axis=0)
    out_ref[...] = (jnp.dot(w2_ref[...], h2, preferred_element_type=jnp.float32)
                    + b2_ref[...])


# ----------------------------------------------------------------------------
# Parameter construction (deterministic, PyTorch-style uniform init).
# ----------------------------------------------------------------------------
def init_conv1d(key, c_out, c_in, ksize=2):
    kw, kb = jax.random.split(key)
    bound = 1.0 / jnp.sqrt(c_in * ksize)
    w = jax.random.uniform(kw, (c_out, c_in, ksize), jnp.float32, -bound, bound)
    b = jax.random.uniform(kb, (c_out,), jnp.float32, -bound, bound)
    return w, b


def init_params(key, input_c, action_dim):
    keys = jax.random.split(key, 5)
    return {
        "conv_0":      init_conv1d(keys[0], 8, input_c),
        "conv_gate_0": init_conv1d(keys[1], 8, input_c),
        "conv_1":      init_conv1d(keys[2], 12, 8),
        "conv_gate_1": init_conv1d(keys[3], 12, 8),
        "conv_2":      init_conv1d(keys[4], action_dim, 12),
    }


# ----------------------------------------------------------------------------
# Weight packing: fused tap matrices + stacked biases, zero-padded to 8-mults.
# ----------------------------------------------------------------------------
def _pack_gated(conv_a, conv_g, c_in_pad, c_out_pad):
    """W = [[wa_a, wb_a], [wa_g, wb_g]] (2*c_out_pad, 2*c_in_pad); bias stacked."""
    wa, ba = conv_a
    wg, bg = conv_g
    c_out, c_in, _ = wa.shape
    w = jnp.zeros((2 * c_out_pad, 2 * c_in_pad), jnp.float32)
    w = w.at[:c_out, :c_in].set(wa[:, :, 0])
    w = w.at[:c_out, c_in_pad:c_in_pad + c_in].set(wa[:, :, 1])
    w = w.at[c_out_pad:c_out_pad + c_out, :c_in].set(wg[:, :, 0])
    w = w.at[c_out_pad:c_out_pad + c_out, c_in_pad:c_in_pad + c_in].set(wg[:, :, 1])
    b = jnp.zeros((2 * c_out_pad, 1), jnp.float32)
    b = b.at[:c_out, 0].set(ba)
    b = b.at[c_out_pad:c_out_pad + c_out, 0].set(bg)
    return w, b


def _pack_head(conv, c_in_pad, c_out_pad):
    wh, bh = conv
    c_out, c_in, _ = wh.shape
    w = jnp.zeros((c_out_pad, 2 * c_in_pad), jnp.float32)
    w = w.at[:c_out, :c_in].set(wh[:, :, 0])
    w = w.at[:c_out, c_in_pad:c_in_pad + c_in].set(wh[:, :, 1])
    b = jnp.zeros((c_out_pad, 1), jnp.float32)
    b = b.at[:c_out, 0].set(bh)
    return w, b


# ----------------------------------------------------------------------------
# Wrapper: lane-dense layout, VMEM-budgeted batch blocking, resident weights.
# ----------------------------------------------------------------------------
def gated_cnn_forward(x, params, *, vmem_budget_bytes=12 << 20):
    x = x.astype(jnp.float32)
    n, c_in, l = x.shape
    assert l > 7, "sequence length must exceed the total receptive field (8)"
    h0 = params["conv_0"][0].shape[0]       # 8
    h1 = params["conv_1"][0].shape[0]       # 12
    a_dim = params["conv_2"][0].shape[0]
    l_out = l - 7                           # (-1) dil1, (-2) dil2, (-4) dil4

    c_in_pad = _round_up(c_in, 8)
    h0_pad = _round_up(h0, 8)
    h1_pad = _round_up(h1, 8)
    a_pad = _round_up(a_dim, 8)

    w0, b0 = _pack_gated(params["conv_0"], params["conv_gate_0"], c_in_pad, h0_pad)
    w1, b1 = _pack_gated(params["conv_1"], params["conv_gate_1"], h0_pad, h1_pad)
    w2, b2 = _pack_head(params["conv_2"], h1_pad, a_pad)

    # --- batch blocking: lane-dense (multiple-of-128) blocks sized to VMEM ---
    lane_mult = 128 // math.gcd(l, 128)     # smallest b with (b*l) % 128 == 0
    # Rough live-bytes model: double-buffered in/out tiles + ~96 live rows of
    # f32 intermediates per lane position.
    rows_live = 2 * c_in_pad + 2 * a_pad + 96
    max_b_budget = max(1, vmem_budget_bytes // (rows_live * l * 4))

    if n <= lane_mult or n * l <= 128:
        b_blk = _round_up(max(n, 1), lane_mult)        # single lane-dense step
    else:
        steps = max(2, pl.cdiv(n, max_b_budget))       # >= 2 steps (v7x megacore)
        b_blk = _round_up(pl.cdiv(n, steps), lane_mult)
    n_pad = _round_up(n, b_blk)
    grid = (n_pad // b_blk,)
    f_blk = b_blk * l

    # (N, C, L) -> (c_in_pad, n_pad*L): channels on sublanes, batch*len on lanes.
    xt = jnp.transpose(x, (1, 0, 2))
    xt = jnp.pad(xt, ((0, c_in_pad - c_in), (0, n_pad - n), (0, 0)))
    x_flat = xt.reshape(c_in_pad, n_pad * l)

    jnp_roll = _roll_matches_jnp()
    kernel = partial(gated_cnn_kernel, h0_pad=h0_pad, h1_pad=h1_pad,
                     jnp_roll=jnp_roll)

    flops_per_pos = 2 * ((2 * h0_pad) * (2 * c_in_pad)
                         + (2 * h1_pad) * (2 * h0_pad)
                         + a_pad * (2 * h1_pad))
    cost = pl.CostEstimate(
        flops=flops_per_pos * n_pad * l,
        transcendentals=2 * (h0_pad + h1_pad) * n_pad * l,
        bytes_accessed=4 * (x_flat.size + a_pad * n_pad * l
                            + w0.size + w1.size + w2.size
                            + b0.size + b1.size + b2.size),
    )

    out = pl.pallas_call(
        kernel,
        out_shape=jax.ShapeDtypeStruct((a_pad, n_pad * l), jnp.float32),
        grid=grid,
        in_specs=[
            pl.BlockSpec((c_in_pad, f_blk), lambda i: (0, i)),
            pl.BlockSpec(w0.shape, lambda i: (0, 0)),   # resident weights
            pl.BlockSpec(b0.shape, lambda i: (0, 0)),
            pl.BlockSpec(w1.shape, lambda i: (0, 0)),
            pl.BlockSpec(b1.shape, lambda i: (0, 0)),
            pl.BlockSpec(w2.shape, lambda i: (0, 0)),
            pl.BlockSpec(b2.shape, lambda i: (0, 0)),
        ],
        out_specs=pl.BlockSpec((a_pad, f_blk), lambda i: (0, i)),
        compiler_params=pltpu.CompilerParams(
            dimension_semantics=("parallel",),
            vmem_limit_bytes=32 * 1024 * 1024,
        ),
        cost_estimate=cost,
    )(x_flat, w0, b0, w1, b1, w2, b2)

    # (a_pad, n_pad*L) -> (N, A, L_out), then torch-style squeeze.
    y = out[:a_dim].reshape(a_dim, n_pad, l)[:, :n, :l_out]
    return jnp.squeeze(jnp.transpose(y, (1, 0, 2)))


# ----------------------------------------------------------------------------
# Pure-JAX reference for correctness.
# ----------------------------------------------------------------------------
def conv1d_ref(x, w, b, dilation):
    y = jax.lax.conv_general_dilated(
        x, w, window_strides=(1,), padding="VALID",
        rhs_dilation=(dilation,), dimension_numbers=("NCH", "OIH", "NCH"))
    return y + b[None, :, None]


def gated_cnn_ref(x, params):
    x = x.astype(jnp.float32)
    a = conv1d_ref(x, *params["conv_0"], 1)
    g = conv1d_ref(x, *params["conv_gate_0"], 1)
    h = jnp.tanh(a) * jax.nn.sigmoid(g)
    a = conv1d_ref(h, *params["conv_1"], 2)
    g = conv1d_ref(h, *params["conv_gate_1"], 2)
    h = jnp.tanh(a) * jax.nn.sigmoid(g)
    h = conv1d_ref(h, *params["conv_2"], 4)
    return jnp.squeeze(h)


if __name__ == "__main__":
    key = jax.random.PRNGKey(0)
    k_x, k_p = jax.random.split(key)

    N, input_c, L, action_dim = 2, 4, 16, 3
    x = jax.random.normal(k_x, (N, input_c, L), jnp.float32)
    params = init_params(k_p, input_c, action_dim)

    out = jax.block_until_ready(gated_cnn_forward(x, params))

    ref = gated_cnn_ref(x, params)
    assert out.shape == ref.shape, (out.shape, ref.shape)
    assert jnp.allclose(out, ref, atol=1e-5, rtol=1e-5), \
        float(jnp.max(jnp.abs(out - ref)))

    print("KERNEL_OK")
</pallas_src>

<mosaic_0001>
module attributes {stable_mosaic.version = 11 : i64} {
  func.func @k(%arg0: memref<8x128xf32, #tpu.memory_space<vmem>>, %arg1: memref<8x128xf32, #tpu.memory_space<vmem>>) attributes {dimension_semantics = [], scalar_prefetch = 0 : i64, scratch_operands = 0 : i64, tpu.core_type = #tpu.core_type<tc>} {
    %c0 = arith.constant 0 : index
    %c0_0 = arith.constant 0 : index
    %0 = vector.load %arg0[%c0, %c0_0] : memref<8x128xf32, #tpu.memory_space<vmem>>, vector<8x128xf32>
    %c1_i32 = arith.constant 1 : i32
    %1 = tpu.dynamic_rotate %0 by %c1_i32 dim 1 : vector<8x128xf32>, i32 -> vector<8x128xf32>
    %c0_1 = arith.constant 0 : index
    %c0_2 = arith.constant 0 : index
    %2 = vector.load %arg1[%c0_1, %c0_2] : memref<8x128xf32, #tpu.memory_space<vmem>>, vector<8x128xf32>
    tpu.vector_store %arg1[%c0_1, %c0_2], %1 {strides = array<i32>} : memref<8x128xf32, #tpu.memory_space<vmem>>, vector<8x128xf32>,
    return
  }
}

</mosaic_0001>

<llo_original>
// kernel: tpu_custom_call.1
$region0: #{tpu_custom_call.1}
  #allocation0 [shape = 'u32[]', space=smem, size = 0x4, offset = 0x4, fixed_abs, tag = 'smem constant byte address 0x4 - core index']
  #allocation1 [shape = 'u32[72,128]{1,0:T(1,128)}', space=vmem, size = 0x9000, scoped, tag = 'internal scratch']
  %s0 = inlined_call_operand.hbm [shape: f32[8,128], index: 0, kind: input, shape index: {}]
  %s1 = inlined_call_operand.hbm [shape: f32[8,128], index: 1, kind: output, shape index: {}]
  %s2 = sld [smem:[#allocation0]]
  $region18: #{tpu_custom_call.1} parent=0
    _
  %s4 = ssub.s32 1, %s2
  %s5 = scalar_select 0, %s4, %s2
  $region1: #{tpu_custom_call.1} parent=0
    #allocation2 [shape = 'u8[4096]{0}', space=vmem, size = 0x1000, scoped, tag = 'input window, operand 0, single buffered']
    #allocation3 [shape = 's32[1]{0}', space=sflag, size = 0x4, scoped, tag = 'scoped memory for tpu_custom_call.1']
    #allocation4 [shape = 's32[1]{0}', space=sflag, size = 0x4, scoped, tag = 'scoped memory for tpu_custom_call.1']
    #allocation5 [shape = 'u8[4096]{0}', space=vmem, size = 0x1000, scoped, tag = 'output window, operand 0, single buffered']
    %6 = vsyncpa [#allocation3], 0
    %7 = vsyncpa [#allocation4], 0
    // Predicated region
    $region2: #{tpu_custom_call.1} parent=1 // pred_check
      _
    $region3: #{tpu_custom_call.1} parent=1 // pred_check_branch
      %9 = sbr.rel (0) target = $region5
    $region4: #{tpu_custom_call.1} parent=1 // pred_region
      %11 = vsyncadd [#allocation3], 0
      %s13 = sshll.u32 %s0, 4
      %s14 = int_to_ptr.hbm [resolvable:$true] %s13
      %s15 = sshll.u32 [#allocation2], 4
      %s16 = int_to_ptr.vmem [resolvable:$true] %s15
      %18 = dma.hbm_to_vmem [thread:$0]  %s14, 128, %s16, [#allocation3]
    $region5: #{tpu_custom_call.1} parent=1 // pred_fallthru
      _
    // Predicated region
    $region6: #{tpu_custom_call.1} parent=1 // pred_check
      _
    $region7: #{tpu_custom_call.1} parent=1 // pred_check_branch
      %20 = sbr.rel (0) target = $region9
    $region8: #{tpu_custom_call.1} parent=1 // pred_region
      %22 = dma.done [#allocation3], 128
    $region9: #{tpu_custom_call.1} parent=1 // pred_fallthru
      _
    %v23 = vld [vmem:[#allocation2] sm:$0xff]
    %24 = vrot.lane.b32.xlu0 %v23, 1
    %v25 = vpop.permute.xlu0 %24
    %26 = vst [vmem:[#allocation5] sm:$0xff] %v25
    // Predicated region
    $region10: #{tpu_custom_call.1} parent=1 // pred_check
      _
    $region11: #{tpu_custom_call.1} parent=1 // pred_check_branch
      %28 = sbr.rel (0) target = $region13
    $region12: #{tpu_custom_call.1} parent=1 // pred_region
      %30 = vsyncadd [#allocation4], 0
      %s32 = sshll.u32 [#allocation5], 4
      %s33 = int_to_ptr.vmem [resolvable:$true] %s32
      %s34 = sshll.u32 %s1, 4
      %s35 = int_to_ptr.hbm [resolvable:$true] %s34
      %37 = dma.vmem_to_hbm [thread:$0]  %s33, 128, %s35, [#allocation4]
    $region13: #{tpu_custom_call.1} parent=1 // pred_fallthru
      _
    // Predicated region
    $region14: #{tpu_custom_call.1} parent=1 // pred_check
      _
    $region15: #{tpu_custom_call.1} parent=1 // pred_check_branch
      %39 = sbr.rel (0) target = $region17
    $region16: #{tpu_custom_call.1} parent=1 // pred_region
      %41 = dma.done [#allocation4], 128
    $region17: #{tpu_custom_call.1} parent=1 // pred_fallthru
      _
    %42 = vsyncpa [#allocation3], 1
    %43 = vsyncpa [#allocation4], 1

</llo_original>
